<compile_context>
chip_gen: v7x
topology: tpu7x:2x2x1
jax: 0.10.0
libtpu: 0.0.40
codegen_flags: <defaults>
</compile_context>

<pallas_src>
import jax
import jax.numpy as jnp
from jax.experimental import pallas as pl
from jax.experimental.pallas import tpu as pltpu

NUM_CLASSES = 6
IN_CHANNELS = 3
HIDDEN = 5
BN_EPS = 1e-5
_LANE = 128


def _fused_pixel_mlp_kernel(x_ref, w1_ref, b1_ref, w2_ref, b2_ref, o_ref):
    """Per-pixel MLP over a dense (rows, 128) pixel tile per channel.

    x_ref : (1, Cin,  R, 128)  VMEM
    w1_ref: (Hid, Cin)         SMEM  (BN already folded in)
    b1_ref: (Hid,)             SMEM
    w2_ref: (Cout, Hid)        SMEM
    b2_ref: (Cout,)            SMEM
    o_ref : (1, Cout, R, 128)  VMEM
    """
    hidden, cin = w1_ref.shape
    cout = w2_ref.shape[0]

    # Full-vreg 2-D tiles per input channel.
    xs = [x_ref[0, i] for i in range(cin)]               # each (R, 128)

    # Hidden layer: unrolled scalar*tile FMAs (weights from SMEM), then ReLU.
    hs = []
    for j in range(hidden):
        hj = xs[0] * w1_ref[j, 0]
        for i in range(1, cin):
            hj = hj + xs[i] * w1_ref[j, i]
        hs.append(jnp.maximum(hj + b1_ref[j], 0.0))       # (R, 128)

    # Output layer: one dense (R, 128) store per output channel.
    for c in range(cout):
        oc = hs[0] * w2_ref[c, 0]
        for j in range(1, hidden):
            oc = oc + hs[j] * w2_ref[c, j]
        o_ref[0, c] = oc + b2_ref[c]


def fused_forward(x_nchw, params, *, max_rows=512):
    """x_nchw: (N, Cin, H, W) float32 -> (N, Cout, H, W) float32."""
    w1, b1, gamma, beta, run_mean, run_var, w2, b2 = params
    N, Cin, H, W = x_nchw.shape
    Cout = w2.shape[0]
    hw = H * W

    # Fold BatchNorm (inference semantics) and conv1 bias into conv1.
    scale = gamma / jnp.sqrt(run_var + BN_EPS)                       # (HIDDEN,)
    w1_mat = (w1.reshape(HIDDEN, Cin) * scale[:, None]).astype(jnp.float32)
    b1_vec = ((b1 - run_mean) * scale + beta).astype(jnp.float32)
    w2_mat = w2.reshape(Cout, HIDDEN).astype(jnp.float32)
    b2_vec = b2.astype(jnp.float32)

    # Pixel axis -> (rows, 128) so per-channel slabs are dense 2-D tiles.
    rows = pl.cdiv(hw, _LANE)
    if rows <= max_rows:
        r_tile = rows                 # block dim == full dim -> no 8-pad needed
        rows_pad = rows
    else:
        r_tile = max_rows             # multiple of 8
        rows_pad = pl.cdiv(rows, r_tile) * r_tile
    hw_pad = rows_pad * _LANE

    x3 = x_nchw.reshape(N, Cin, hw).astype(jnp.float32)
    if hw_pad != hw:
        x3 = jnp.pad(x3, ((0, 0), (0, 0), (0, hw_pad - hw)))
    x4 = x3.reshape(N, Cin, rows_pad, _LANE)

    grid = (N, rows_pad // r_tile)

    out4 = pl.pallas_call(
        _fused_pixel_mlp_kernel,
        out_shape=jax.ShapeDtypeStruct((N, Cout, rows_pad, _LANE), jnp.float32),
        grid=grid,
        in_specs=[
            pl.BlockSpec((1, Cin, r_tile, _LANE), lambda n, t: (n, 0, t, 0)),
            pl.BlockSpec(memory_space=pltpu.MemorySpace.SMEM),
            pl.BlockSpec(memory_space=pltpu.MemorySpace.SMEM),
            pl.BlockSpec(memory_space=pltpu.MemorySpace.SMEM),
            pl.BlockSpec(memory_space=pltpu.MemorySpace.SMEM),
        ],
        out_specs=pl.BlockSpec((1, Cout, r_tile, _LANE), lambda n, t: (n, 0, t, 0)),
        compiler_params=pltpu.CompilerParams(
            dimension_semantics=("parallel", "parallel")),
    )(x4, w1_mat, b1_vec, w2_mat, b2_vec)

    out3 = out4.reshape(N, Cout, hw_pad)
    if hw_pad != hw:
        out3 = out3[:, :, :hw]
    return out3.reshape(N, Cout, H, W)


def reference_forward(x_nchw, params):
    """Plain JAX reference of the same math for sanity check."""
    w1, b1, gamma, beta, run_mean, run_var, w2, b2 = params
    N, Cin, H, W = x_nchw.shape
    x = jnp.transpose(x_nchw, (0, 2, 3, 1)).reshape(-1, Cin)
    h = x @ w1.reshape(HIDDEN, Cin).T + b1
    scale = gamma / jnp.sqrt(run_var + BN_EPS)
    h = (h - run_mean) * scale + beta
    h = jnp.maximum(h, 0.0)
    y = h @ w2.reshape(NUM_CLASSES, HIDDEN).T + b2
    return jnp.transpose(y.reshape(N, H, W, NUM_CLASSES), (0, 3, 1, 2))


def make_params(key):
    k1, k2, k3, k4, k5, k6 = jax.random.split(key, 6)
    w1 = jax.random.normal(k1, (HIDDEN, IN_CHANNELS, 1, 1), jnp.float32) * 0.1
    b1 = jax.random.normal(k2, (HIDDEN,), jnp.float32) * 0.1
    gamma = jax.random.normal(k3, (HIDDEN,), jnp.float32) * 0.1 + 1.0
    beta = jax.random.normal(k4, (HIDDEN,), jnp.float32) * 0.1
    run_mean = jnp.zeros((HIDDEN,), jnp.float32)
    run_var = jnp.ones((HIDDEN,), jnp.float32)
    w2 = jax.random.normal(k5, (NUM_CLASSES, HIDDEN, 1, 1), jnp.float32) * 0.1
    b2 = jax.random.normal(k6, (NUM_CLASSES,), jnp.float32) * 0.1
    return (w1, b1, gamma, beta, run_mean, run_var, w2, b2)


if __name__ == "__main__":
    key = jax.random.PRNGKey(0)
    kx, kp = jax.random.split(key)
    # Small NCHW input: batch=2, channels=3, spatial=16x16 (256 pixels/image)
    x = jax.random.normal(kx, (2, IN_CHANNELS, 16, 16), jnp.float32)
    params = make_params(kp)

    out = fused_forward(x, params)
    out = jax.block_until_ready(out)

    ref = reference_forward(x, params)
    assert out.shape == (2, NUM_CLASSES, 16, 16)
    assert jnp.allclose(out, ref, atol=1e-5, rtol=1e-5), "mismatch vs reference"
    print("KERNEL_OK")
</pallas_src>

<mosaic_0001>
module attributes {stable_mosaic.version = 11 : i64} {
  func.func @_fused_pixel_mlp_kernel(%arg0: i32, %arg1: i32, %arg2: memref<1x3x2x128xf32, #tpu.memory_space<vmem>>, %arg3: memref<5x3xf32, #tpu.memory_space<smem>>, %arg4: memref<5xf32, #tpu.memory_space<smem>>, %arg5: memref<6x5xf32, #tpu.memory_space<smem>>, %arg6: memref<6xf32, #tpu.memory_space<smem>>, %arg7: memref<1x6x2x128xf32, #tpu.memory_space<vmem>>) attributes {dimension_semantics = [#tpu.dimension_semantics<parallel>, #tpu.dimension_semantics<parallel>], iteration_bounds = array<i64: 2, 1>, scalar_prefetch = 0 : i64, scratch_operands = 0 : i64, tpu.core_type = #tpu.core_type<tc>, window_params = [{transform_indices = @transform_0, window_bounds = array<i64: 1, 3, 2, 128>}, {transform_indices = @transform_1, window_bounds = array<i64: 5, 3>}, {transform_indices = @transform_2, window_bounds = array<i64: 5>}, {transform_indices = @transform_3, window_bounds = array<i64: 6, 5>}, {transform_indices = @transform_4, window_bounds = array<i64: 6>}, {transform_indices = @transform_5, window_bounds = array<i64: 1, 6, 2, 128>}]} {
    %c0 = arith.constant 0 : index
    %c0_0 = arith.constant 0 : index
    %c0_1 = arith.constant 0 : index
    %c0_2 = arith.constant 0 : index
    %0 = vector.load %arg2[%c0, %c0_0, %c0_1, %c0_2] : memref<1x3x2x128xf32, #tpu.memory_space<vmem>>, vector<1x1x2x128xf32>
    %1 = vector.shape_cast %0 : vector<1x1x2x128xf32> to vector<2x128xf32>
    %c0_3 = arith.constant 0 : index
    %c1 = arith.constant 1 : index
    %c0_4 = arith.constant 0 : index
    %c0_5 = arith.constant 0 : index
    %2 = vector.load %arg2[%c0_3, %c1, %c0_4, %c0_5] : memref<1x3x2x128xf32, #tpu.memory_space<vmem>>, vector<1x1x2x128xf32>
    %3 = vector.shape_cast %2 : vector<1x1x2x128xf32> to vector<2x128xf32>
    %c0_6 = arith.constant 0 : index
    %c2 = arith.constant 2 : index
    %c0_7 = arith.constant 0 : index
    %c0_8 = arith.constant 0 : index
    %4 = vector.load %arg2[%c0_6, %c2, %c0_7, %c0_8] : memref<1x3x2x128xf32, #tpu.memory_space<vmem>>, vector<1x1x2x128xf32>
    %5 = vector.shape_cast %4 : vector<1x1x2x128xf32> to vector<2x128xf32>
    %c0_9 = arith.constant 0 : index
    %c0_10 = arith.constant 0 : index
    %6 = memref.load %arg3[%c0_9, %c0_10] : memref<5x3xf32, #tpu.memory_space<smem>>
    %7 = vector.broadcast %6 : f32 to vector<2x128xf32>
    %8 = arith.mulf %1, %7 : vector<2x128xf32>
    %c0_11 = arith.constant 0 : index
    %c1_12 = arith.constant 1 : index
    %9 = memref.load %arg3[%c0_11, %c1_12] : memref<5x3xf32, #tpu.memory_space<smem>>
    %10 = vector.broadcast %9 : f32 to vector<2x128xf32>
    %11 = arith.mulf %3, %10 : vector<2x128xf32>
    %12 = arith.addf %8, %11 : vector<2x128xf32>
    %c0_13 = arith.constant 0 : index
    %c2_14 = arith.constant 2 : index
    %13 = memref.load %arg3[%c0_13, %c2_14] : memref<5x3xf32, #tpu.memory_space<smem>>
    %14 = vector.broadcast %13 : f32 to vector<2x128xf32>
    %15 = arith.mulf %5, %14 : vector<2x128xf32>
    %16 = arith.addf %12, %15 : vector<2x128xf32>
    %c0_15 = arith.constant 0 : index
    %17 = memref.load %arg4[%c0_15] : memref<5xf32, #tpu.memory_space<smem>>
    %18 = vector.broadcast %17 : f32 to vector<2x128xf32>
    %19 = arith.addf %16, %18 : vector<2x128xf32>
    %cst = arith.constant 0.000000e+00 : f32
    %20 = vector.broadcast %cst : f32 to vector<2x128xf32>
    %21 = arith.maximumf %19, %20 : vector<2x128xf32>
    %c1_16 = arith.constant 1 : index
    %c0_17 = arith.constant 0 : index
    %22 = memref.load %arg3[%c1_16, %c0_17] : memref<5x3xf32, #tpu.memory_space<smem>>
    %23 = vector.broadcast %22 : f32 to vector<2x128xf32>
    %24 = arith.mulf %1, %23 : vector<2x128xf32>
    %c1_18 = arith.constant 1 : index
    %c1_19 = arith.constant 1 : index
    %25 = memref.load %arg3[%c1_18, %c1_19] : memref<5x3xf32, #tpu.memory_space<smem>>
    %26 = vector.broadcast %25 : f32 to vector<2x128xf32>
    %27 = arith.mulf %3, %26 : vector<2x128xf32>
    %28 = arith.addf %24, %27 : vector<2x128xf32>
    %c1_20 = arith.constant 1 : index
    %c2_21 = arith.constant 2 : index
    %29 = memref.load %arg3[%c1_20, %c2_21] : memref<5x3xf32, #tpu.memory_space<smem>>
    %30 = vector.broadcast %29 : f32 to vector<2x128xf32>
    %31 = arith.mulf %5, %30 : vector<2x128xf32>
    %32 = arith.addf %28, %31 : vector<2x128xf32>
    %c1_22 = arith.constant 1 : index
    %33 = memref.load %arg4[%c1_22] : memref<5xf32, #tpu.memory_space<smem>>
    %34 = vector.broadcast %33 : f32 to vector<2x128xf32>
    %35 = arith.addf %32, %34 : vector<2x128xf32>
    %cst_23 = arith.constant 0.000000e+00 : f32
    %36 = vector.broadcast %cst_23 : f32 to vector<2x128xf32>
    %37 = arith.maximumf %35, %36 : vector<2x128xf32>
    %c2_24 = arith.constant 2 : index
    %c0_25 = arith.constant 0 : index
    %38 = memref.load %arg3[%c2_24, %c0_25] : memref<5x3xf32, #tpu.memory_space<smem>>
    %39 = vector.broadcast %38 : f32 to vector<2x128xf32>
    %40 = arith.mulf %1, %39 : vector<2x128xf32>
    %c2_26 = arith.constant 2 : index
    %c1_27 = arith.constant 1 : index
    %41 = memref.load %arg3[%c2_26, %c1_27] : memref<5x3xf32, #tpu.memory_space<smem>>
    %42 = vector.broadcast %41 : f32 to vector<2x128xf32>
    %43 = arith.mulf %3, %42 : vector<2x128xf32>
    %44 = arith.addf %40, %43 : vector<2x128xf32>
    %c2_28 = arith.constant 2 : index
    %c2_29 = arith.constant 2 : index
    %45 = memref.load %arg3[%c2_28, %c2_29] : memref<5x3xf32, #tpu.memory_space<smem>>
    %46 = vector.broadcast %45 : f32 to vector<2x128xf32>
    %47 = arith.mulf %5, %46 : vector<2x128xf32>
    %48 = arith.addf %44, %47 : vector<2x128xf32>
    %c2_30 = arith.constant 2 : index
    %49 = memref.load %arg4[%c2_30] : memref<5xf32, #tpu.memory_space<smem>>
    %50 = vector.broadcast %49 : f32 to vector<2x128xf32>
    %51 = arith.addf %48, %50 : vector<2x128xf32>
    %cst_31 = arith.constant 0.000000e+00 : f32
    %52 = vector.broadcast %cst_31 : f32 to vector<2x128xf32>
    %53 = arith.maximumf %51, %52 : vector<2x128xf32>
    %c3 = arith.constant 3 : index
    %c0_32 = arith.constant 0 : index
    %54 = memref.load %arg3[%c3, %c0_32] : memref<5x3xf32, #tpu.memory_space<smem>>
    %55 = vector.broadcast %54 : f32 to vector<2x128xf32>
    %56 = arith.mulf %1, %55 : vector<2x128xf32>
    %c3_33 = arith.constant 3 : index
    %c1_34 = arith.constant 1 : index
    %57 = memref.load %arg3[%c3_33, %c1_34] : memref<5x3xf32, #tpu.memory_space<smem>>
    %58 = vector.broadcast %57 : f32 to vector<2x128xf32>
    %59 = arith.mulf %3, %58 : vector<2x128xf32>
    %60 = arith.addf %56, %59 : vector<2x128xf32>
    %c3_35 = arith.constant 3 : index
    %c2_36 = arith.constant 2 : index
    %61 = memref.load %arg3[%c3_35, %c2_36] : memref<5x3xf32, #tpu.memory_space<smem>>
    %62 = vector.broadcast %61 : f32 to vector<2x128xf32>
    %63 = arith.mulf %5, %62 : vector<2x128xf32>
    %64 = arith.addf %60, %63 : vector<2x128xf32>
    %c3_37 = arith.constant 3 : index
    %65 = memref.load %arg4[%c3_37] : memref<5xf32, #tpu.memory_space<smem>>
    %66 = vector.broadcast %65 : f32 to vector<2x128xf32>
    %67 = arith.addf %64, %66 : vector<2x128xf32>
    %cst_38 = arith.constant 0.000000e+00 : f32
    %68 = vector.broadcast %cst_38 : f32 to vector<2x128xf32>
    %69 = arith.maximumf %67, %68 : vector<2x128xf32>
    %c4 = arith.constant 4 : index
    %c0_39 = arith.constant 0 : index
    %70 = memref.load %arg3[%c4, %c0_39] : memref<5x3xf32, #tpu.memory_space<smem>>
    %71 = vector.broadcast %70 : f32 to vector<2x128xf32>
    %72 = arith.mulf %1, %71 : vector<2x128xf32>
    %c4_40 = arith.constant 4 : index
    %c1_41 = arith.constant 1 : index
    %73 = memref.load %arg3[%c4_40, %c1_41] : memref<5x3xf32, #tpu.memory_space<smem>>
    %74 = vector.broadcast %73 : f32 to vector<2x128xf32>
    %75 = arith.mulf %3, %74 : vector<2x128xf32>
    %76 = arith.addf %72, %75 : vector<2x128xf32>
    %c4_42 = arith.constant 4 : index
    %c2_43 = arith.constant 2 : index
    %77 = memref.load %arg3[%c4_42, %c2_43] : memref<5x3xf32, #tpu.memory_space<smem>>
    %78 = vector.broadcast %77 : f32 to vector<2x128xf32>
    %79 = arith.mulf %5, %78 : vector<2x128xf32>
    %80 = arith.addf %76, %79 : vector<2x128xf32>
    %c4_44 = arith.constant 4 : index
    %81 = memref.load %arg4[%c4_44] : memref<5xf32, #tpu.memory_space<smem>>
    %82 = vector.broadcast %81 : f32 to vector<2x128xf32>
    %83 = arith.addf %80, %82 : vector<2x128xf32>
    %cst_45 = arith.constant 0.000000e+00 : f32
    %84 = vector.broadcast %cst_45 : f32 to vector<2x128xf32>
    %85 = arith.maximumf %83, %84 : vector<2x128xf32>
    %c0_46 = arith.constant 0 : index
    %c0_47 = arith.constant 0 : index
    %86 = memref.load %arg5[%c0_46, %c0_47] : memref<6x5xf32, #tpu.memory_space<smem>>
    %87 = vector.broadcast %86 : f32 to vector<2x128xf32>
    %88 = arith.mulf %21, %87 : vector<2x128xf32>
    %c0_48 = arith.constant 0 : index
    %c1_49 = arith.constant 1 : index
    %89 = memref.load %arg5[%c0_48, %c1_49] : memref<6x5xf32, #tpu.memory_space<smem>>
    %90 = vector.broadcast %89 : f32 to vector<2x128xf32>
    %91 = arith.mulf %37, %90 : vector<2x128xf32>
    %92 = arith.addf %88, %91 : vector<2x128xf32>
    %c0_50 = arith.constant 0 : index
    %c2_51 = arith.constant 2 : index
    %93 = memref.load %arg5[%c0_50, %c2_51] : memref<6x5xf32, #tpu.memory_space<smem>>
    %94 = vector.broadcast %93 : f32 to vector<2x128xf32>
    %95 = arith.mulf %53, %94 : vector<2x128xf32>
    %96 = arith.addf %92, %95 : vector<2x128xf32>
    %c0_52 = arith.constant 0 : index
    %c3_53 = arith.constant 3 : index
    %97 = memref.load %arg5[%c0_52, %c3_53] : memref<6x5xf32, #tpu.memory_space<smem>>
    %98 = vector.broadcast %97 : f32 to vector<2x128xf32>
    %99 = arith.mulf %69, %98 : vector<2x128xf32>
    %100 = arith.addf %96, %99 : vector<2x128xf32>
    %c0_54 = arith.constant 0 : index
    %c4_55 = arith.constant 4 : index
    %101 = memref.load %arg5[%c0_54, %c4_55] : memref<6x5xf32, #tpu.memory_space<smem>>
    %102 = vector.broadcast %101 : f32 to vector<2x128xf32>
    %103 = arith.mulf %85, %102 : vector<2x128xf32>
    %104 = arith.addf %100, %103 : vector<2x128xf32>
    %c0_56 = arith.constant 0 : index
    %105 = memref.load %arg6[%c0_56] : memref<6xf32, #tpu.memory_space<smem>>
    %106 = vector.broadcast %105 : f32 to vector<2x128xf32>
    %107 = arith.addf %104, %106 : vector<2x128xf32>
    %c0_57 = arith.constant 0 : index
    %c0_58 = arith.constant 0 : index
    %c0_59 = arith.constant 0 : index
    %c0_60 = arith.constant 0 : index
    %108 = vector.load %arg7[%c0_57, %c0_58, %c0_59, %c0_60] : memref<1x6x2x128xf32, #tpu.memory_space<vmem>>, vector<1x1x2x128xf32>
    %109 = vector.shape_cast %108 : vector<1x1x2x128xf32> to vector<2x128xf32>
    %110 = vector.shape_cast %107 : vector<2x128xf32> to vector<1x1x2x128xf32>
    tpu.vector_store %arg7[%c0_57, %c0_58, %c0_59, %c0_60], %110 {strides = array<i32>} : memref<1x6x2x128xf32, #tpu.memory_space<vmem>>, vector<1x1x2x128xf32>,
    %c1_61 = arith.constant 1 : index
    %c0_62 = arith.constant 0 : index
    %111 = memref.load %arg5[%c1_61, %c0_62] : memref<6x5xf32, #tpu.memory_space<smem>>
    %112 = vector.broadcast %111 : f32 to vector<2x128xf32>
    %113 = arith.mulf %21, %112 : vector<2x128xf32>
    %c1_63 = arith.constant 1 : index
    %c1_64 = arith.constant 1 : index
    %114 = memref.load %arg5[%c1_63, %c1_64] : memref<6x5xf32, #tpu.memory_space<smem>>
    %115 = vector.broadcast %114 : f32 to vector<2x128xf32>
    %116 = arith.mulf %37, %115 : vector<2x128xf32>
    %117 = arith.addf %113, %116 : vector<2x128xf32>
    %c1_65 = arith.constant 1 : index
    %c2_66 = arith.constant 2 : index
    %118 = memref.load %arg5[%c1_65, %c2_66] : memref<6x5xf32, #tpu.memory_space<smem>>
    %119 = vector.broadcast %118 : f32 to vector<2x128xf32>
    %120 = arith.mulf %53, %119 : vector<2x128xf32>
    %121 = arith.addf %117, %120 : vector<2x128xf32>
    %c1_67 = arith.constant 1 : index
    %c3_68 = arith.constant 3 : index
    %122 = memref.load %arg5[%c1_67, %c3_68] : memref<6x5xf32, #tpu.memory_space<smem>>
    %123 = vector.broadcast %122 : f32 to vector<2x128xf32>
    %124 = arith.mulf %69, %123 : vector<2x128xf32>
    %125 = arith.addf %121, %124 : vector<2x128xf32>
    %c1_69 = arith.constant 1 : index
    %c4_70 = arith.constant 4 : index
    %126 = memref.load %arg5[%c1_69, %c4_70] : memref<6x5xf32, #tpu.memory_space<smem>>
    %127 = vector.broadcast %126 : f32 to vector<2x128xf32>
    %128 = arith.mulf %85, %127 : vector<2x128xf32>
    %129 = arith.addf %125, %128 : vector<2x128xf32>
    %c1_71 = arith.constant 1 : index
    %130 = memref.load %arg6[%c1_71] : memref<6xf32, #tpu.memory_space<smem>>
    %131 = vector.broadcast %130 : f32 to vector<2x128xf32>
    %132 = arith.addf %129, %131 : vector<2x128xf32>
    %c0_72 = arith.constant 0 : index
    %c1_73 = arith.constant 1 : index
    %c0_74 = arith.constant 0 : index
    %c0_75 = arith.constant 0 : index
    %133 = vector.load %arg7[%c0_72, %c1_73, %c0_74, %c0_75] : memref<1x6x2x128xf32, #tpu.memory_space<vmem>>, vector<1x1x2x128xf32>
    %134 = vector.shape_cast %133 : vector<1x1x2x128xf32> to vector<2x128xf32>
    %135 = vector.shape_cast %132 : vector<2x128xf32> to vector<1x1x2x128xf32>
    tpu.vector_store %arg7[%c0_72, %c1_73, %c0_74, %c0_75], %135 {strides = array<i32>} : memref<1x6x2x128xf32, #tpu.memory_space<vmem>>, vector<1x1x2x128xf32>,
    %c2_76 = arith.constant 2 : index
    %c0_77 = arith.constant 0 : index
    %136 = memref.load %arg5[%c2_76, %c0_77] : memref<6x5xf32, #tpu.memory_space<smem>>
    %137 = vector.broadcast %136 : f32 to vector<2x128xf32>
    %138 = arith.mulf %21, %137 : vector<2x128xf32>
    %c2_78 = arith.constant 2 : index
    %c1_79 = arith.constant 1 : index
    %139 = memref.load %arg5[%c2_78, %c1_79] : memref<6x5xf32, #tpu.memory_space<smem>>
    %140 = vector.broadcast %139 : f32 to vector<2x128xf32>
    %141 = arith.mulf %37, %140 : vector<2x128xf32>
    %142 = arith.addf %138, %141 : vector<2x128xf32>
    %c2_80 = arith.constant 2 : index
    %c2_81 = arith.constant 2 : index
    %143 = memref.load %arg5[%c2_80, %c2_81] : memref<6x5xf32, #tpu.memory_space<smem>>
    %144 = vector.broadcast %143 : f32 to vector<2x128xf32>
    %145 = arith.mulf %53, %144 : vector<2x128xf32>
    %146 = arith.addf %142, %145 : vector<2x128xf32>
    %c2_82 = arith.constant 2 : index
    %c3_83 = arith.constant 3 : index
    %147 = memref.load %arg5[%c2_82, %c3_83] : memref<6x5xf32, #tpu.memory_space<smem>>
    %148 = vector.broadcast %147 : f32 to vector<2x128xf32>
    %149 = arith.mulf %69, %148 : vector<2x128xf32>
    %150 = arith.addf %146, %149 : vector<2x128xf32>
    %c2_84 = arith.constant 2 : index
    %c4_85 = arith.constant 4 : index
    %151 = memref.load %arg5[%c2_84, %c4_85] : memref<6x5xf32, #tpu.memory_space<smem>>
    %152 = vector.broadcast %151 : f32 to vector<2x128xf32>
    %153 = arith.mulf %85, %152 : vector<2x128xf32>
    %154 = arith.addf %150, %153 : vector<2x128xf32>
    %c2_86 = arith.constant 2 : index
    %155 = memref.load %arg6[%c2_86] : memref<6xf32, #tpu.memory_space<smem>>
    %156 = vector.broadcast %155 : f32 to vector<2x128xf32>
    %157 = arith.addf %154, %156 : vector<2x128xf32>
    %c0_87 = arith.constant 0 : index
    %c2_88 = arith.constant 2 : index
    %c0_89 = arith.constant 0 : index
    %c0_90 = arith.constant 0 : index
    %158 = vector.load %arg7[%c0_87, %c2_88, %c0_89, %c0_90] : memref<1x6x2x128xf32, #tpu.memory_space<vmem>>, vector<1x1x2x128xf32>
    %159 = vector.shape_cast %158 : vector<1x1x2x128xf32> to vector<2x128xf32>
    %160 = vector.shape_cast %157 : vector<2x128xf32> to vector<1x1x2x128xf32>
    tpu.vector_store %arg7[%c0_87, %c2_88, %c0_89, %c0_90], %160 {strides = array<i32>} : memref<1x6x2x128xf32, #tpu.memory_space<vmem>>, vector<1x1x2x128xf32>,
    %c3_91 = arith.constant 3 : index
    %c0_92 = arith.constant 0 : index
    %161 = memref.load %arg5[%c3_91, %c0_92] : memref<6x5xf32, #tpu.memory_space<smem>>
    %162 = vector.broadcast %161 : f32 to vector<2x128xf32>
    %163 = arith.mulf %21, %162 : vector<2x128xf32>
    %c3_93 = arith.constant 3 : index
    %c1_94 = arith.constant 1 : index
    %164 = memref.load %arg5[%c3_93, %c1_94] : memref<6x5xf32, #tpu.memory_space<smem>>
    %165 = vector.broadcast %164 : f32 to vector<2x128xf32>
    %166 = arith.mulf %37, %165 : vector<2x128xf32>
    %167 = arith.addf %163, %166 : vector<2x128xf32>
    %c3_95 = arith.constant 3 : index
    %c2_96 = arith.constant 2 : index
    %168 = memref.load %arg5[%c3_95, %c2_96] : memref<6x5xf32, #tpu.memory_space<smem>>
    %169 = vector.broadcast %168 : f32 to vector<2x128xf32>
    %170 = arith.mulf %53, %169 : vector<2x128xf32>
    %171 = arith.addf %167, %170 : vector<2x128xf32>
    %c3_97 = arith.constant 3 : index
    %c3_98 = arith.constant 3 : index
    %172 = memref.load %arg5[%c3_97, %c3_98] : memref<6x5xf32, #tpu.memory_space<smem>>
    %173 = vector.broadcast %172 : f32 to vector<2x128xf32>
    %174 = arith.mulf %69, %173 : vector<2x128xf32>
    %175 = arith.addf %171, %174 : vector<2x128xf32>
    %c3_99 = arith.constant 3 : index
    %c4_100 = arith.constant 4 : index
    %176 = memref.load %arg5[%c3_99, %c4_100] : memref<6x5xf32, #tpu.memory_space<smem>>
    %177 = vector.broadcast %176 : f32 to vector<2x128xf32>
    %178 = arith.mulf %85, %177 : vector<2x128xf32>
    %179 = arith.addf %175, %178 : vector<2x128xf32>
    %c3_101 = arith.constant 3 : index
    %180 = memref.load %arg6[%c3_101] : memref<6xf32, #tpu.memory_space<smem>>
    %181 = vector.broadcast %180 : f32 to vector<2x128xf32>
    %182 = arith.addf %179, %181 : vector<2x128xf32>
    %c0_102 = arith.constant 0 : index
    %c3_103 = arith.constant 3 : index
    %c0_104 = arith.constant 0 : index
    %c0_105 = arith.constant 0 : index
    %183 = vector.load %arg7[%c0_102, %c3_103, %c0_104, %c0_105] : memref<1x6x2x128xf32, #tpu.memory_space<vmem>>, vector<1x1x2x128xf32>
    %184 = vector.shape_cast %183 : vector<1x1x2x128xf32> to vector<2x128xf32>
    %185 = vector.shape_cast %182 : vector<2x128xf32> to vector<1x1x2x128xf32>
    tpu.vector_store %arg7[%c0_102, %c3_103, %c0_104, %c0_105], %185 {strides = array<i32>} : memref<1x6x2x128xf32, #tpu.memory_space<vmem>>, vector<1x1x2x128xf32>,
    %c4_106 = arith.constant 4 : index
    %c0_107 = arith.constant 0 : index
    %186 = memref.load %arg5[%c4_106, %c0_107] : memref<6x5xf32, #tpu.memory_space<smem>>
    %187 = vector.broadcast %186 : f32 to vector<2x128xf32>
    %188 = arith.mulf %21, %187 : vector<2x128xf32>
    %c4_108 = arith.constant 4 : index
    %c1_109 = arith.constant 1 : index
    %189 = memref.load %arg5[%c4_108, %c1_109] : memref<6x5xf32, #tpu.memory_space<smem>>
    %190 = vector.broadcast %189 : f32 to vector<2x128xf32>
    %191 = arith.mulf %37, %190 : vector<2x128xf32>
    %192 = arith.addf %188, %191 : vector<2x128xf32>
    %c4_110 = arith.constant 4 : index
    %c2_111 = arith.constant 2 : index
    %193 = memref.load %arg5[%c4_110, %c2_111] : memref<6x5xf32, #tpu.memory_space<smem>>
    %194 = vector.broadcast %193 : f32 to vector<2x128xf32>
    %195 = arith.mulf %53, %194 : vector<2x128xf32>
    %196 = arith.addf %192, %195 : vector<2x128xf32>
    %c4_112 = arith.constant 4 : index
    %c3_113 = arith.constant 3 : index
    %197 = memref.load %arg5[%c4_112, %c3_113] : memref<6x5xf32, #tpu.memory_space<smem>>
    %198 = vector.broadcast %197 : f32 to vector<2x128xf32>
    %199 = arith.mulf %69, %198 : vector<2x128xf32>
    %200 = arith.addf %196, %199 : vector<2x128xf32>
    %c4_114 = arith.constant 4 : index
    %c4_115 = arith.constant 4 : index
    %201 = memref.load %arg5[%c4_114, %c4_115] : memref<6x5xf32, #tpu.memory_space<smem>>
    %202 = vector.broadcast %201 : f32 to vector<2x128xf32>
    %203 = arith.mulf %85, %202 : vector<2x128xf32>
    %204 = arith.addf %200, %203 : vector<2x128xf32>
    %c4_116 = arith.constant 4 : index
    %205 = memref.load %arg6[%c4_116] : memref<6xf32, #tpu.memory_space<smem>>
    %206 = vector.broadcast %205 : f32 to vector<2x128xf32>
    %207 = arith.addf %204, %206 : vector<2x128xf32>
    %c0_117 = arith.constant 0 : index
    %c4_118 = arith.constant 4 : index
    %c0_119 = arith.constant 0 : index
    %c0_120 = arith.constant 0 : index
    %208 = vector.load %arg7[%c0_117, %c4_118, %c0_119, %c0_120] : memref<1x6x2x128xf32, #tpu.memory_space<vmem>>, vector<1x1x2x128xf32>
    %209 = vector.shape_cast %208 : vector<1x1x2x128xf32> to vector<2x128xf32>
    %210 = vector.shape_cast %207 : vector<2x128xf32> to vector<1x1x2x128xf32>
    tpu.vector_store %arg7[%c0_117, %c4_118, %c0_119, %c0_120], %210 {strides = array<i32>} : memref<1x6x2x128xf32, #tpu.memory_space<vmem>>, vector<1x1x2x128xf32>,
    %c5 = arith.constant 5 : index
    %c0_121 = arith.constant 0 : index
    %211 = memref.load %arg5[%c5, %c0_121] : memref<6x5xf32, #tpu.memory_space<smem>>
    %212 = vector.broadcast %211 : f32 to vector<2x128xf32>
    %213 = arith.mulf %21, %212 : vector<2x128xf32>
    %c5_122 = arith.constant 5 : index
    %c1_123 = arith.constant 1 : index
    %214 = memref.load %arg5[%c5_122, %c1_123] : memref<6x5xf32, #tpu.memory_space<smem>>
    %215 = vector.broadcast %214 : f32 to vector<2x128xf32>
    %216 = arith.mulf %37, %215 : vector<2x128xf32>
    %217 = arith.addf %213, %216 : vector<2x128xf32>
    %c5_124 = arith.constant 5 : index
    %c2_125 = arith.constant 2 : index
    %218 = memref.load %arg5[%c5_124, %c2_125] : memref<6x5xf32, #tpu.memory_space<smem>>
    %219 = vector.broadcast %218 : f32 to vector<2x128xf32>
    %220 = arith.mulf %53, %219 : vector<2x128xf32>
    %221 = arith.addf %217, %220 : vector<2x128xf32>
    %c5_126 = arith.constant 5 : index
    %c3_127 = arith.constant 3 : index
    %222 = memref.load %arg5[%c5_126, %c3_127] : memref<6x5xf32, #tpu.memory_space<smem>>
    %223 = vector.broadcast %222 : f32 to vector<2x128xf32>
    %224 = arith.mulf %69, %223 : vector<2x128xf32>
    %225 = arith.addf %221, %224 : vector<2x128xf32>
    %c5_128 = arith.constant 5 : index
    %c4_129 = arith.constant 4 : index
    %226 = memref.load %arg5[%c5_128, %c4_129] : memref<6x5xf32, #tpu.memory_space<smem>>
    %227 = vector.broadcast %226 : f32 to vector<2x128xf32>
    %228 = arith.mulf %85, %227 : vector<2x128xf32>
    %229 = arith.addf %225, %228 : vector<2x128xf32>
    %c5_130 = arith.constant 5 : index
    %230 = memref.load %arg6[%c5_130] : memref<6xf32, #tpu.memory_space<smem>>
    %231 = vector.broadcast %230 : f32 to vector<2x128xf32>
    %232 = arith.addf %229, %231 : vector<2x128xf32>
    %c0_131 = arith.constant 0 : index
    %c5_132 = arith.constant 5 : index
    %c0_133 = arith.constant 0 : index
    %c0_134 = arith.constant 0 : index
    %233 = vector.load %arg7[%c0_131, %c5_132, %c0_133, %c0_134] : memref<1x6x2x128xf32, #tpu.memory_space<vmem>>, vector<1x1x2x128xf32>
    %234 = vector.shape_cast %233 : vector<1x1x2x128xf32> to vector<2x128xf32>
    %235 = vector.shape_cast %232 : vector<2x128xf32> to vector<1x1x2x128xf32>
    tpu.vector_store %arg7[%c0_131, %c5_132, %c0_133, %c0_134], %235 {strides = array<i32>} : memref<1x6x2x128xf32, #tpu.memory_space<vmem>>, vector<1x1x2x128xf32>,
    return
  }
  func.func @transform_0(%arg0: i32, %arg1: i32) -> (i32, i32, i32, i32) {
    %c0_i32 = arith.constant 0 : i32
    %c0_i32_0 = arith.constant 0 : i32
    %c0_i32_1 = arith.constant 0 : i32
    return %arg0, %c0_i32, %arg1, %c0_i32_0 : i32, i32, i32, i32
  }
  func.func @transform_1(%arg0: i32, %arg1: i32) -> (i32, i32) {
    %c0_i32 = arith.constant 0 : i32
    %c0_i32_0 = arith.constant 0 : i32
    %c0_i32_1 = arith.constant 0 : i32
    return %c0_i32, %c0_i32_0 : i32, i32
  }
  func.func @transform_2(%arg0: i32, %arg1: i32) -> i32 {
    %c0_i32 = arith.constant 0 : i32
    %c0_i32_0 = arith.constant 0 : i32
    return %c0_i32 : i32
  }
  func.func @transform_3(%arg0: i32, %arg1: i32) -> (i32, i32) {
    %c0_i32 = arith.constant 0 : i32
    %c0_i32_0 = arith.constant 0 : i32
    %c0_i32_1 = arith.constant 0 : i32
    return %c0_i32, %c0_i32_0 : i32, i32
  }
  func.func @transform_4(%arg0: i32, %arg1: i32) -> i32 {
    %c0_i32 = arith.constant 0 : i32
    %c0_i32_0 = arith.constant 0 : i32
    return %c0_i32 : i32
  }
  func.func @transform_5(%arg0: i32, %arg1: i32) -> (i32, i32, i32, i32) {
    %c0_i32 = arith.constant 0 : i32
    %c0_i32_0 = arith.constant 0 : i32
    %c0_i32_1 = arith.constant 0 : i32
    return %arg0, %c0_i32, %arg1, %c0_i32_0 : i32, i32, i32, i32
  }
}

</mosaic_0001>

<llo_original>
// kernel: tpu_custom_call.1
$region0: #{tpu_custom_call.1}
  #allocation0 [shape = 'u32[]', space=smem, size = 0x4, offset = 0x4, fixed_abs, tag = 'smem constant byte address 0x4 - core index']
  #allocation1 [shape = 'u32[144,128]{1,0:T(1,128)}', space=vmem, size = 0x12000, scoped, tag = 'internal scratch']
  %s0 = inlined_call_operand.vmem [shape: f32[2,3,2,128], index: 0, kind: input, shape index: {}]
  %s1 = inlined_call_operand.vmem [shape: f32[5,3], index: 1, kind: input, shape index: {}]
  %s2 = inlined_call_operand.vmem [shape: f32[5], index: 2, kind: input, shape index: {}]
  %s3 = inlined_call_operand.vmem [shape: f32[6,5], index: 3, kind: input, shape index: {}]
  %s4 = inlined_call_operand.vmem [shape: f32[6], index: 4, kind: input, shape index: {}]
  %s5 = inlined_call_operand.hbm [shape: f32[2,6,2,128], index: 5, kind: output, shape index: {}]
  %s6 = sld [smem:[#allocation0]]
  $region69: #{tpu_custom_call.1} parent=0
    _
  %s8 = ssub.s32 1, %s6
  %s9 = scalar_select 0, %s8, %s6
  $region1: #{tpu_custom_call.1} parent=0
    #allocation2 [shape = 'u8[4096]{0}', space=smem, size = 0x1000, scoped, tag = 'input window, operand 1, single buffered']
    #allocation3 [shape = 's32[2]{0}', space=sflag, size = 0x8, scoped, tag = 'scoped memory for tpu_custom_call.1']
    #allocation4 [shape = 's32[2]{0}', space=sflag, size = 0x8, scoped, tag = 'scoped memory for tpu_custom_call.1']
    #allocation5 [shape = 'u8[512]{0}', space=smem, size = 0x200, scoped, tag = 'input window, operand 2, single buffered']
    #allocation6 [shape = 's32[1]{0}', space=sflag, size = 0x4, scoped, tag = 'scoped memory for tpu_custom_call.1']
    #allocation7 [shape = 'u8[4096]{0}', space=smem, size = 0x1000, scoped, tag = 'input window, operand 3, single buffered']
    #allocation8 [shape = 'u8[512]{0}', space=smem, size = 0x200, scoped, tag = 'input window, operand 4, single buffered']
    #allocation9 [shape = 's32[1]{0}', space=sflag, size = 0x4, scoped, tag = 'scoped memory for tpu_custom_call.1']
    #allocation10 [shape = 'u8[12288]{0}', space=vmem, size = 0x3000, scoped, tag = 'output window, operand 0']
    %10 = vsyncpa [#allocation4], 0
    %11 = vsyncpa [#allocation6], 0
    %12 = vsyncpa [#allocation9], 0
    %13 = vsyncpa [#allocation3], 0
    %s14 = scalar_lea.sflag [#allocation3], 1
    %15 = vsyncpa %s14, 0
    loop: start=0, step=1, limit=4
    $region2: #{tpu_custom_call.1} parent=1 // loop_pre_header
      _
    $region3: #{tpu_custom_call.1} parent=1 // loop_header
      %s17 = sphi 0, %s21
      %p18 = scmp.ge.s32.totalorder %s17, 4
      %s24 = sphi 0, %s36
      %s25 = sphi 0, %s32
      %s26 = sphi 0, %s24
      %s27 = sphi 0, %s25
      %s28 = sphi 0, %s26
      %s29 = sphi 0, %s27
      %s41 = sphi 0, %s43
      %s44 = sphi 0, %s41
      %s45 = sphi 0, %s44
      %s61 = sphi 0, %s45
      %s65 = sphi 0, %s65
      %s67 = sphi 0, %s65
      %s68 = sphi 0, %s67
      %s82 = sphi 0, %s68
      %s86 = sphi 0, %s86
      %s88 = sphi 0, %s86
      %s89 = sphi 0, %s88
      %s103 = sphi 0, %s89
      %s107 = sphi 0, %s107
      %s109 = sphi 0, %s107
      %s110 = sphi 0, %s109
      %s124 = sphi 0, %s110
      %s128 = sphi 0, %s128
      %s130 = sphi 0, %s128
      %s131 = sphi 0, %s130
      %s145 = sphi 0, %s131
      %s153 = sphi 0, %s155
      %s156 = sphi 0, %s153
      %s157 = sphi 0, %s156
      %s173 = sphi 0, %s157
    $region4: #{tpu_custom_call.1} parent=1 // loop_header_branch
      %20 = sbr.rel (%p18) target = $region8
    $region5: #{tpu_custom_call.1} parent=1 // loop_body
      %s22 = ssub.s32 %s17, 1
      %s23 = ssub.s32 %s17, 2
      %s30 = sadd.s32 1, %s25
      %p31 = scmp.ge.s32.totalorder %s30, 1
      %s32 = scalar_select %p31, 0, %s30
      %s33 = sadd.s32 1, %s24
      %s34 = scalar_select %p31, %s33, %s24
      %p35 = scmp.ge.s32.totalorder %s34, 2
      %s36 = scalar_select %p35, 0, %s34
      %s37 = ssub.s32 %s24, %s36
      %s38 = ssub.s32 %s25, %s32
      %s39 = sor.u32 %s37, %s38
      %p40 = scmp.eq.s32.totalorder %s39, 0
      %s42 = sadd.s32 %s41, 1
      %s43 = scalar_select %p40, %s41, %s42
      %p46 = pneg %p40
      %p47 = scmp.eq.s32.totalorder %s17, 1
      %p48 = por %p46, %p47
      %p49 = scmp.ne.s32.totalorder %s41, %s44
      %p50 = scmp.eq.s32.totalorder %s17, 0
      %p51 = por %p49, %p50
      %p52 = scmp.ne.s32.totalorder %s41, %s44
      %p53 = scmp.eq.s32.totalorder %s22, 1
      %p54 = por %p52, %p53
      %p55 = scmp.ne.s32.totalorder %s44, %s45
      %p56 = scmp.eq.s32.totalorder %s22, 0
      %p57 = por %p55, %p56
      %p58 = scmp.ne.s32.totalorder %s44, %s45
      %p59 = scmp.eq.s32.totalorder %s23, 1
      %p60 = por %p58, %p59
      %p62 = scmp.ne.s32.totalorder %s45, %s61
      %p63 = scmp.eq.s32.totalorder %s23, 0
      %p64 = por %p62, %p63
      %s66 = sadd.s32 %s65, 1
      %p69 = scmp.eq.s32.totalorder %s17, 1
      %p70 = scmp.ne.s32.totalorder %s65, %s67
      %p71 = scmp.eq.s32.totalorder %s17, 0
      %p72 = por %p70, %p71
      %p73 = scmp.ne.s32.totalorder %s65, %s67
      %p74 = scmp.eq.s32.totalorder %s22, 1
      %p75 = por %p73, %p74
      %p76 = scmp.ne.s32.totalorder %s67, %s68
      %p77 = scmp.eq.s32.totalorder %s22, 0
      %p78 = por %p76, %p77
      %p79 = scmp.ne.s32.totalorder %s67, %s68
      %p80 = scmp.eq.s32.totalorder %s23, 1
      %p81 = por %p79, %p80
      %p83 = scmp.ne.s32.totalorder %s68, %s82
      %p84 = scmp.eq.s32.totalorder %s23, 0
      %p85 = por %p83, %p84
      %s87 = sadd.s32 %s86, 1
      %p90 = scmp.eq.s32.totalorder %s17, 1
      %p91 = scmp.ne.s32.totalorder %s86, %s88
      %p92 = scmp.eq.s32.totalorder %s17, 0
      %p93 = por %p91, %p92
      %p94 = scmp.ne.s32.totalorder %s86, %s88
      %p95 = scmp.eq.s32.totalorder %s22, 1
      %p96 = por %p94, %p95
      %p97 = scmp.ne.s32.totalorder %s88, %s89
      %p98 = scmp.eq.s32.totalorder %s22, 0
      %p99 = por %p97, %p98
      %p100 = scmp.ne.s32.totalorder %s88, %s89
      %p101 = scmp.eq.s32.totalorder %s23, 1
      %p102 = por %p100, %p101
      %p104 = scmp.ne.s32.totalorder %s89, %s103
      %p105 = scmp.eq.s32.totalorder %s23, 0
      %p106 = por %p104, %p105
      %s108 = sadd.s32 %s107, 1
      %p111 = scmp.eq.s32.totalorder %s17, 1
      %p112 = scmp.ne.s32.totalorder %s107, %s109
      %p113 = scmp.eq.s32.totalorder %s17, 0
      %p114 = por %p112, %p113
      %p115 = scmp.ne.s32.totalorder %s107, %s109
      %p116 = scmp.eq.s32.totalorder %s22, 1
      %p117 = por %p115, %p116
      %p118 = scmp.ne.s32.totalorder %s109, %s110
      %p119 = scmp.eq.s32.totalorder %s22, 0
      %p120 = por %p118, %p119
      %p121 = scmp.ne.s32.totalorder %s109, %s110
      %p122 = scmp.eq.s32.totalorder %s23, 1
      %p123 = por %p121, %p122
      %p125 = scmp.ne.s32.totalorder %s110, %s124
      %p126 = scmp.eq.s32.totalorder %s23, 0
      %p127 = por %p125, %p126
      %s129 = sadd.s32 %s128, 1
      %p132 = scmp.eq.s32.totalorder %s17, 1
      %p133 = scmp.ne.s32.totalorder %s128, %s130
      %p134 = scmp.eq.s32.totalorder %s17, 0
      %p135 = por %p133, %p134
      %p136 = scmp.ne.s32.totalorder %s128, %s130
      %p137 = scmp.eq.s32.totalorder %s22, 1
      %p138 = por %p136, %p137
      %p139 = scmp.ne.s32.totalorder %s130, %s131
      %p140 = scmp.eq.s32.totalorder %s22, 0
      %p141 = por %p139, %p140
      %p142 = scmp.ne.s32.totalorder %s130, %s131
      %p143 = scmp.eq.s32.totalorder %s23, 1
      %p144 = por %p142, %p143
      %p146 = scmp.ne.s32.totalorder %s131, %s145
      %p147 = scmp.eq.s32.totalorder %s23, 0
      %p148 = por %p146, %p147
      %s149 = ssub.s32 %s24, %s36
      %s150 = ssub.s32 %s25, %s32
      %s151 = sor.u32 %s149, %s150
      %p152 = scmp.eq.s32.totalorder %s151, 0
      %s154 = sadd.s32 %s153, 1
      %s155 = scalar_select %p152, %s153, %s154
      %p158 = pneg %p152
      %p159 = scmp.eq.s32.totalorder %s17, 1
      %p160 = por %p158, %p159
      %p161 = scmp.ne.s32.totalorder %s153, %s156
      %p162 = scmp.eq.s32.totalorder %s17, 0
      %p163 = por %p161, %p162
      %p164 = scmp.ne.s32.totalorder %s153, %s156
      %p165 = scmp.eq.s32.totalorder %s22, 1
      %p166 = por %p164, %p165
      %p167 = scmp.ne.s32.totalorder %s156, %s157
      %p168 = scmp.eq.s32.totalorder %s22, 0
      %p169 = por %p167, %p168
      %p170 = scmp.ne.s32.totalorder %s156, %s157
      %p171 = scmp.eq.s32.totalorder %s23, 1
      %p172 = por %p170, %p171
      %p174 = scmp.ne.s32.totalorder %s157, %s173
      %p175 = scmp.eq.s32.totalorder %s23, 0
      %p176 = por %p174, %p175
      %p177 = scmp.le.s32.totalorder 1, %s17
      %p178 = scmp.lt.s32.totalorder %s17, 3
      %p179 = pnand %p177, %p178
      %p180 = pneg %p179
      // Predicated region
      $region9: #{tpu_custom_call.1} parent=5 // pred_check
        _
      $region10: #{tpu_custom_call.1} parent=5 // pred_check_branch
        %182 = sbr.rel (%p179) target = $region12
      $region11: #{tpu_custom_call.1} parent=5 // pred_region
        %s183 = ssub.s32 %s17, 1
        // Predicated region
        $region13: #{tpu_custom_call.1} parent=11 // pred_check
          %p184 = pneg %p78
        $region14: #{tpu_custom_call.1} parent=11 // pred_check_branch
          %186 = sbr.rel (%p184) target = $region16
        $region15: #{tpu_custom_call.1} parent=11 // pred_region
          %s188 = ssub.s32 128, 128
          %189 = vsyncadd [#allocation4], %s188
          %s191 = sshll.u32 %s1, 4
          %s192 = int_to_ptr.vmem [resolvable:$true] %s191
          %194 = dma.vmem_to_smem %s192, 128, [#allocation2], [#allocation4]
        $region16: #{tpu_custom_call.1} parent=11 // pred_fallthru
          _
        // Predicated region
        $region17: #{tpu_custom_call.1} parent=11 // pred_check
          %p195 = pneg %p99
        $region18: #{tpu_custom_call.1} parent=11 // pred_check_branch
          %197 = sbr.rel (%p195) target = $region20
        $region19: #{tpu_custom_call.1} parent=11 // pred_region
          %s199 = ssub.s32 16, 16
          %200 = vsyncadd [#allocation6], %s199
          %s202 = sshll.u32 %s2, 4
          %s203 = int_to_ptr.vmem [resolvable:$true] %s202
          %205 = dma.vmem_to_smem %s203, 16, [#allocation5], [#allocation6]
        $region20: #{tpu_custom_call.1} parent=11 // pred_fallthru
          _
        // Predicated region
        $region21: #{tpu_custom_call.1} parent=11 // pred_check
          %p206 = pneg %p120
        $region22: #{tpu_custom_call.1} parent=11 // pred_check_branch
          %208 = sbr.rel (%p206) target = $region24
        $region23: #{tpu_custom_call.1} parent=11 // pred_region
          %s210 = ssub.s32 128, 128
          %211 = vsyncadd [#allocation6], %s210
          %s213 = sshll.u32 %s3, 4
          %s214 = int_to_ptr.vmem [resolvable:$true] %s213
          %216 = dma.vmem_to_smem %s214, 128, [#allocation7], [#allocation6]
        $region24: #{tpu_custom_call.1} parent=11 // pred_fallthru
          _
        // Predicated region
        $region25: #{tpu_custom_call.1} parent=11 // pred_check
          %p217 = pneg %p141
        $region26: #{tpu_custom_call.1} parent=11 // pred_check_branch
          %219 = sbr.rel (%p217) target = $region28
        $region27: #{tpu_custom_call.1} parent=11 // pred_region
          %s221 = ssub.s32 16, 16
          %222 = vsyncadd [#allocation9], %s221
          %s224 = sshll.u32 %s4, 4
          %s225 = int_to_ptr.vmem [resolvable:$true] %s224
          %227 = dma.vmem_to_smem %s225, 16, [#allocation8], [#allocation9]
        $region28: #{tpu_custom_call.1} parent=11 // pred_fallthru
          _
      $region12: #{tpu_custom_call.1} parent=5 // pred_fallthru
        _
      %p228 = scmp.lt.s32.totalorder %s17, 2
      // Predicated region
      $region29: #{tpu_custom_call.1} parent=5 // pred_check
        %p229 = pneg %p228
      $region30: #{tpu_custom_call.1} parent=5 // pred_check_branch
        %231 = sbr.rel (%p229) target = $region32
      $region31: #{tpu_custom_call.1} parent=5 // pred_region
        // Predicated region
        $region33: #{tpu_custom_call.1} parent=31 // pred_check
          %p232 = pneg %p51
        $region34: #{tpu_custom_call.1} parent=31 // pred_check_branch
          %234 = sbr.rel (%p232) target = $region36
        $region35: #{tpu_custom_call.1} parent=31 // pred_region
          %p235 = scmp.lt.s32.totalorder %s24, 1
          %s236 = scalar_select %p235, %s24, 1
          %p237 = scmp.lt.s32.totalorder %s25, 0
          %s238 = scalar_select %p237, %s25, 0
          %s239 = smul.addr %s236, 3
          %s240 = sadd.s32 %s238, %s239
          %s241 = smul.addr %s240, 2
          %s242 = scalar_lea.vmem %s0, %s241
        $region36: #{tpu_custom_call.1} parent=31 // pred_fallthru
          _
      $region32: #{tpu_custom_call.1} parent=5 // pred_fallthru
        _
      %p243 = scmp.le.s32.totalorder 1, %s17
      %p244 = scmp.lt.s32.totalorder %s17, 3
      %p245 = pnand %p243, %p244
      %p246 = pneg %p245
      // Predicated region
      $region37: #{tpu_custom_call.1} parent=5 // pred_check
        _
      $region38: #{tpu_custom_call.1} parent=5 // pred_check_branch
        %248 = sbr.rel (%p245) target = $region40
      $region39: #{tpu_custom_call.1} parent=5 // pred_region
        %s249 = ssub.s32 %s17, 1
        // Predicated region
        $region41: #{tpu_custom_call.1} parent=39 // pred_check
          %p250 = pneg %p78
        $region42: #{tpu_custom_call.1} parent=39 // pred_check_branch
          %252 = sbr.rel (%p250) target = $region44
        $region43: #{tpu_custom_call.1} parent=39 // pred_region
          %253 = dma.done [#allocation4], 128
        $region44: #{tpu_custom_call.1} parent=39 // pred_fallthru
          _
        // Predicated region
        $region45: #{tpu_custom_call.1} parent=39 // pred_check
          %p254 = pneg %p99
        $region46: #{tpu_custom_call.1} parent=39 // pred_check_branch
          %256 = sbr.rel (%p254) target = $region48
        $region47: #{tpu_custom_call.1} parent=39 // pred_region
          %257 = dma.done [#allocation6], 16
        $region48: #{tpu_custom_call.1} parent=39 // pred_fallthru
          _
        // Predicated region
        $region49: #{tpu_custom_call.1} parent=39 // pred_check
          %p258 = pneg %p120
        $region50: #{tpu_custom_call.1} parent=39 // pred_check_branch
          %260 = sbr.rel (%p258) target = $region52
        $region51: #{tpu_custom_call.1} parent=39 // pred_region
          %261 = dma.done [#allocation6], 128
        $region52: #{tpu_custom_call.1} parent=39 // pred_fallthru
          _
        // Predicated region
        $region53: #{tpu_custom_call.1} parent=39 // pred_check
          %p262 = pneg %p141
        $region54: #{tpu_custom_call.1} parent=39 // pred_check_branch
          %264 = sbr.rel (%p262) target = $region56
        $region55: #{tpu_custom_call.1} parent=39 // pred_region
          %265 = dma.done [#allocation9], 16
        $region56: #{tpu_custom_call.1} parent=39 // pred_fallthru
          _
        %266 = sfence
        %p267 = scmp.lt.s32.totalorder %s26, 1
        %s268 = scalar_select %p267, %s26, 1
        %p269 = scmp.lt.s32.totalorder %s27, 0
        %s270 = scalar_select %p269, %s27, 0
        %s271 = smul.addr %s268, 3
        %s272 = sadd.s32 %s270, %s271
        %s273 = smul.addr %s272, 2
        %s274 = scalar_lea.vmem %s0, %s273
        %p275 = pneg %p57
        %p276 = pneg %p54
        %p277 = pneg %p78
        %p278 = pneg %p75
        %p279 = pneg %p99
        %p280 = pneg %p96
        %p281 = pneg %p120
        %p282 = pneg %p117
        %p283 = pneg %p141
        %p284 = pneg %p138
        %p285 = pneg %p169
        %p286 = pneg %p166
        %s287 = sand.u32 %s156, 1
        %s288 = scalar_lea.sflag [#allocation3], %s287
        %s289 = sand.u32 %s156, 1
        %s290 = smul.addr %s289, 12
        %s291 = scalar_lea.vmem [#allocation10], %s290
        %p292 = scmp.lt.s32.totalorder %s26, 1
        %s293 = scalar_select %p292, %s26, 1
        %p294 = scmp.lt.s32.totalorder %s27, 0
        %s295 = scalar_select %p294, %s27, 0
        %s296 = smul.addr %s293, 3
        %s297 = sadd.s32 %s295, %s296
        %s298 = smul.addr %s297, 2
        %s299 = scalar_lea.vmem %s0, %s298
        %v300 = vld [vmem:[%s299] sm:$0x3]
        %s301 = scalar_lea.vmem %s299, 2
        %v302 = vld [vmem:[%s301] sm:$0x3]
        %s303 = scalar_lea.vmem %s299, 4
        %v304 = vld [vmem:[%s303] sm:$0x3]
        %s305 = sld [smem:[#allocation2]]
        %v306 = vstv %s305
        %v307 = vmul.f32 %v300, %v306
        %s308 = sld [smem:[#allocation2 + $0x1]]
        %v309 = vstv %s308
        %v310 = vmul.f32 %v302, %v309
        %v311 = vadd.f32 %v307, %v310
        %s312 = sld [smem:[#allocation2 + $0x2]]
        %v313 = vstv %s312
        %v314 = vmul.f32 %v304, %v313
        %v315 = vadd.f32 %v311, %v314
        %s316 = sld [smem:[#allocation5]]
        %v317 = vstv %s316
        %v318 = vadd.f32 %v315, %v317
        %v319 = vmax.f32 %v318, 0.0
        %s320 = sld [smem:[#allocation2 + $0x80]]
        %v321 = vstv %s320
        %v322 = vmul.f32 %v300, %v321
        %s323 = sld [smem:[#allocation2 + $0x81]]
        %v324 = vstv %s323
        %v325 = vmul.f32 %v302, %v324
        %v326 = vadd.f32 %v322, %v325
        %s327 = sld [smem:[#allocation2 + $0x82]]
        %v328 = vstv %s327
        %v329 = vmul.f32 %v304, %v328
        %v330 = vadd.f32 %v326, %v329
        %s331 = sld [smem:[#allocation5 + $0x1]]
        %v332 = vstv %s331
        %v333 = vadd.f32 %v330, %v332
        %v334 = vmax.f32 %v333, 0.0
        %s335 = sld [smem:[#allocation2 + $0x100]]
        %v336 = vstv %s335
        %v337 = vmul.f32 %v300, %v336
        %s338 = sld [smem:[#allocation2 + $0x101]]
        %v339 = vstv %s338
        %v340 = vmul.f32 %v302, %v339
        %v341 = vadd.f32 %v337, %v340
        %s342 = sld [smem:[#allocation2 + $0x102]]
        %v343 = vstv %s342
        %v344 = vmul.f32 %v304, %v343
        %v345 = vadd.f32 %v341, %v344
        %s346 = sld [smem:[#allocation5 + $0x2]]
        %v347 = vstv %s346
        %v348 = vadd.f32 %v345, %v347
        %v349 = vmax.f32 %v348, 0.0
        %s350 = sld [smem:[#allocation2 + $0x180]]
        %v351 = vstv %s350
        %v352 = vmul.f32 %v300, %v351
        %s353 = sld [smem:[#allocation2 + $0x181]]
        %v354 = vstv %s353
        %v355 = vmul.f32 %v302, %v354
        %v356 = vadd.f32 %v352, %v355
        %s357 = sld [smem:[#allocation2 + $0x182]]
        %v358 = vstv %s357
        %v359 = vmul.f32 %v304, %v358
        %v360 = vadd.f32 %v356, %v359
        %s361 = sld [smem:[#allocation5 + $0x3]]
        %v362 = vstv %s361
        %v363 = vadd.f32 %v360, %v362
        %v364 = vmax.f32 %v363, 0.0
        %s365 = sld [smem:[#allocation2 + $0x200]]
        %v366 = vstv %s365
        %v367 = vmul.f32 %v300, %v366
        %s368 = sld [smem:[#allocation2 + $0x201]]
        %v369 = vstv %s368
        %v370 = vmul.f32 %v302, %v369
        %v371 = vadd.f32 %v367, %v370
        %s372 = sld [smem:[#allocation2 + $0x202]]
        %v373 = vstv %s372
        %v374 = vmul.f32 %v304, %v373
        %v375 = vadd.f32 %v371, %v374
        %s376 = sld [smem:[#allocation5 + $0x4]]
        %v377 = vstv %s376
        %v378 = vadd.f32 %v375, %v377
        %v379 = vmax.f32 %v378, 0.0
        %s380 = sld [smem:[#allocation7]]
        %v381 = vstv %s380
        %v382 = vmul.f32 %v319, %v381
        %s383 = sld [smem:[#allocation7 + $0x1]]
        %v384 = vstv %s383
        %v385 = vmul.f32 %v334, %v384
        %v386 = vadd.f32 %v382, %v385
        %s387 = sld [smem:[#allocation7 + $0x2]]
        %v388 = vstv %s387
        %v389 = vmul.f32 %v349, %v388
        %v390 = vadd.f32 %v386, %v389
        %s391 = sld [smem:[#allocation7 + $0x3]]
        %v392 = vstv %s391
        %v393 = vmul.f32 %v364, %v392
        %v394 = vadd.f32 %v390, %v393
        %s395 = sld [smem:[#allocation7 + $0x4]]
        %v396 = vstv %s395
        %v397 = vmul.f32 %v379, %v396
        %v398 = vadd.f32 %v394, %v397
        %s399 = sld [smem:[#allocation8]]
        %v400 = vstv %s399
        %v401 = vadd.f32 %v398, %v400
        %402 = vst [vmem:[%s291] sm:$0x3] %v401
        %s403 = sld [smem:[#allocation7 + $0x80]]
        %v404 = vstv %s403
        %v405 = vmul.f32 %v319, %v404
        %s406 = sld [smem:[#allocation7 + $0x81]]
        %v407 = vstv %s406
        %v408 = vmul.f32 %v334, %v407
        %v409 = vadd.f32 %v405, %v408
        %s410 = sld [smem:[#allocation7 + $0x82]]
        %v411 = vstv %s410
        %v412 = vmul.f32 %v349, %v411
        %v413 = vadd.f32 %v409, %v412
        %s414 = sld [smem:[#allocation7 + $0x83]]
        %v415 = vstv %s414
        %v416 = vmul.f32 %v364, %v415
        %v417 = vadd.f32 %v413, %v416
        %s418 = sld [smem:[#allocation7 + $0x84]]
        %v419 = vstv %s418
        %v420 = vmul.f32 %v379, %v419
        %v421 = vadd.f32 %v417, %v420
        %s422 = sld [smem:[#allocation8 + $0x1]]
        %v423 = vstv %s422
        %v424 = vadd.f32 %v421, %v423
        %s425 = scalar_lea.vmem %s291, 2 [#allocation10]
        %426 = vst [vmem:[%s425] sm:$0x3] %v424
        %s427 = sld [smem:[#allocation7 + $0x100]]
        %v428 = vstv %s427
        %v429 = vmul.f32 %v319, %v428
        %s430 = sld [smem:[#allocation7 + $0x101]]
        %v431 = vstv %s430
        %v432 = vmul.f32 %v334, %v431
        %v433 = vadd.f32 %v429, %v432
        %s434 = sld [smem:[#allocation7 + $0x102]]
        %v435 = vstv %s434
        %v436 = vmul.f32 %v349, %v435
        %v437 = vadd.f32 %v433, %v436
        %s438 = sld [smem:[#allocation7 + $0x103]]
        %v439 = vstv %s438
        %v440 = vmul.f32 %v364, %v439
        %v441 = vadd.f32 %v437, %v440
        %s442 = sld [smem:[#allocation7 + $0x104]]
        %v443 = vstv %s442
        %v444 = vmul.f32 %v379, %v443
        %v445 = vadd.f32 %v441, %v444
        %s446 = sld [smem:[#allocation8 + $0x2]]
        %v447 = vstv %s446
        %v448 = vadd.f32 %v445, %v447
        %s449 = scalar_lea.vmem %s291, 4 [#allocation10]
        %450 = vst [vmem:[%s449] sm:$0x3] %v448
        %s451 = sld [smem:[#allocation7 + $0x180]]
        %v452 = vstv %s451
        %v453 = vmul.f32 %v319, %v452
        %s454 = sld [smem:[#allocation7 + $0x181]]
        %v455 = vstv %s454
        %v456 = vmul.f32 %v334, %v455
        %v457 = vadd.f32 %v453, %v456
        %s458 = sld [smem:[#allocation7 + $0x182]]
        %v459 = vstv %s458
        %v460 = vmul.f32 %v349, %v459
        %v461 = vadd.f32 %v457, %v460
        %s462 = sld [smem:[#allocation7 + $0x183]]
        %v463 = vstv %s462
        %v464 = vmul.f32 %v364, %v463
        %v465 = vadd.f32 %v461, %v464
        %s466 = sld [smem:[#allocation7 + $0x184]]
        %v467 = vstv %s466
        %v468 = vmul.f32 %v379, %v467
        %v469 = vadd.f32 %v465, %v468
        %s470 = sld [smem:[#allocation8 + $0x3]]
        %v471 = vstv %s470
        %v472 = vadd.f32 %v469, %v471
        %s473 = scalar_lea.vmem %s291, 6 [#allocation10]
        %474 = vst [vmem:[%s473] sm:$0x3] %v472
        %s475 = sld [smem:[#allocation7 + $0x200]]
        %v476 = vstv %s475
        %v477 = vmul.f32 %v319, %v476
        %s478 = sld [smem:[#allocation7 + $0x201]]
        %v479 = vstv %s478
        %v480 = vmul.f32 %v334, %v479
        %v481 = vadd.f32 %v477, %v480
        %s482 = sld [smem:[#allocation7 + $0x202]]
        %v483 = vstv %s482
        %v484 = vmul.f32 %v349, %v483
        %v485 = vadd.f32 %v481, %v484
        %s486 = sld [smem:[#allocation7 + $0x203]]
        %v487 = vstv %s486
        %v488 = vmul.f32 %v364, %v487
        %v489 = vadd.f32 %v485, %v488
        %s490 = sld [smem:[#allocation7 + $0x204]]
        %v491 = vstv %s490
        %v492 = vmul.f32 %v379, %v491
        %v493 = vadd.f32 %v489, %v492
        %s494 = sld [smem:[#allocation8 + $0x4]]
        %v495 = vstv %s494
        %v496 = vadd.f32 %v493, %v495
        %s497 = scalar_lea.vmem %s291, 8 [#allocation10]
        %498 = vst [vmem:[%s497] sm:$0x3] %v496
        %s499 = sld [smem:[#allocation7 + $0x280]]
        %v500 = vstv %s499
        %v501 = vmul.f32 %v319, %v500
        %s502 = sld [smem:[#allocation7 + $0x281]]
        %v503 = vstv %s502
        %v504 = vmul.f32 %v334, %v503
        %v505 = vadd.f32 %v501, %v504
        %s506 = sld [smem:[#allocation7 + $0x282]]
        %v507 = vstv %s506
        %v508 = vmul.f32 %v349, %v507
        %v509 = vadd.f32 %v505, %v508
        %s510 = sld [smem:[#allocation7 + $0x283]]
        %v511 = vstv %s510
        %v512 = vmul.f32 %v364, %v511
        %v513 = vadd.f32 %v509, %v512
        %s514 = sld [smem:[#allocation7 + $0x284]]
        %v515 = vstv %s514
        %v516 = vmul.f32 %v379, %v515
        %v517 = vadd.f32 %v513, %v516
        %s518 = sld [smem:[#allocation8 + $0x5]]
        %v519 = vstv %s518
        %v520 = vadd.f32 %v517, %v519
        %s521 = scalar_lea.vmem %s291, 10 [#allocation10]
        %522 = vst [vmem:[%s521] sm:$0x3] %v520
        %s523 = sand.u32 %s156, 1
        %s524 = scalar_lea.sflag [#allocation3], %s523
        %s525 = sand.u32 %s156, 1
        %s526 = smul.addr %s525, 12
        %s527 = scalar_lea.vmem [#allocation10], %s526
        // Predicated region
        $region57: #{tpu_custom_call.1} parent=39 // pred_check
          %p528 = pneg %p166
        $region58: #{tpu_custom_call.1} parent=39 // pred_check_branch
          %530 = sbr.rel (%p528) target = $region60
        $region59: #{tpu_custom_call.1} parent=39 // pred_region
          %s532 = ssub.s32 192, 192
          %533 = vsyncadd %s524, %s532
          %s534 = smul.addr %s26, 6
          %s535 = sadd.s32 %s27, %s534
          %s536 = smul.addr %s535, 32
          %s537 = scalar_lea.hbm %s5, %s536
          %s538 = sshll.u32 %s527, 4
          %s539 = int_to_ptr.vmem [resolvable:$true] %s538
          %544 = dma.vmem_to_hbm [thread:$0]  %s539, 192, %s537, %s524, 32, 32, 2
        $region60: #{tpu_custom_call.1} parent=39 // pred_fallthru
          _
      $region40: #{tpu_custom_call.1} parent=5 // pred_fallthru
        _
      %p545 = scmp.le.s32.totalorder 2, %s17
      // Predicated region
      $region61: #{tpu_custom_call.1} parent=5 // pred_check
        %p546 = pneg %p545
      $region62: #{tpu_custom_call.1} parent=5 // pred_check_branch
        %548 = sbr.rel (%p546) target = $region64
      $region63: #{tpu_custom_call.1} parent=5 // pred_region
        %s549 = ssub.s32 %s17, 2
        // Predicated region
        $region65: #{tpu_custom_call.1} parent=63 // pred_check
          %p550 = pneg %p172
        $region66: #{tpu_custom_call.1} parent=63 // pred_check_branch
          %552 = sbr.rel (%p550) target = $region68
        $region67: #{tpu_custom_call.1} parent=63 // pred_region
          %s553 = sand.u32 %s157, 1
          %s554 = scalar_lea.sflag [#allocation3], %s553
          %s555 = sand.u32 %s157, 1
          %s556 = smul.addr %s555, 12
          %s557 = scalar_lea.vmem [#allocation10], %s556
          %558 = dma.done %s554, 192
        $region68: #{tpu_custom_call.1} parent=63 // pred_fallthru
          _
      $region64: #{tpu_custom_call.1} parent=5 // pred_fallthru
        _
    $region6: #{tpu_custom_call.1} parent=1 // loop_footer
      %s21 = sadd.s32 1, %s17
    $region7: #{tpu_custom_call.1} parent=1 // loop_footer_branch
      %16 = sbr.rel target = $region3
    $region8: #{tpu_custom_call.1} parent=1 // loop_exit
      _
    %559 = vsyncpa [#allocation3], 1
    %s560 = scalar_lea.sflag [#allocation3], 1
    %561 = vsyncpa %s560, 1
    %562 = vsyncpa [#allocation4], 1
    %s563 = scalar_lea.sflag [#allocation4], 1
    %564 = vsyncpa %s563, 1
    %565 = vsyncpa [#allocation6], 1
    %566 = vsyncpa [#allocation9], 1

</llo_original>
